<compile_context>
chip_gen: v7x
topology: tpu7x:2x2x1
jax: 0.10.0
libtpu: 0.0.40
codegen_flags: <defaults>
</compile_context>

<pallas_src>
import functools

import jax
import jax.numpy as jnp
from jax.experimental import pallas as pl
from jax.experimental.pallas import tpu as pltpu


def _round_up(x, m):
    return (x + m - 1) // m * m


# ----------------------------------------------------------------------------
# Fused NTN kernel: bilinear + linear(concat) + tanh for one batch tile.
# ----------------------------------------------------------------------------
def _ntn_kernel(e1_ref, e2_ref, wb_ref, sel_ref, wu1_ref, wu2_ref, b_ref,
                o_ref, *, out_dim):
    e1 = e1_ref[...]                                   # (TB, D)   bf16
    e2 = e2_ref[...]                                   # (TB, D)   bf16

    # --- Bilinear term ------------------------------------------------------
    # One wide MXU matmul for all K outputs at once (bf16 in, f32 accumulate):
    #   t[b, k*D + j] = sum_i e1[b, i] * W[k, i, j]
    t = jnp.dot(e1, wb_ref[...], preferred_element_type=jnp.float32)  # (TB, K*D)

    # Lane-preserving multiply by e2 replicated K times along lanes — keeps the
    # (TB, K*D) lane-dense layout (no relayout, no cross-lane XLU reduce).
    e2_rep = jnp.concatenate([e2] * out_dim, axis=-1)  # (TB, K*D) bf16
    prod = t * e2_rep.astype(jnp.float32)              # (TB, K*D) f32

    # Grouped D-lane reduction as an MXU matmul against a constant 0/1
    # block-diagonal selector.  prod is split into hi/lo bf16 halves so the
    # reduction matches an f32 reduction (selector entries are exact in bf16);
    # this costs one extra selector pass, riding the MXU's slack.
    hi = prod.astype(jnp.bfloat16)
    lo = (prod - hi.astype(jnp.float32)).astype(jnp.bfloat16)
    sel = sel_ref[...]                                 # (K*D, Kp) bf16
    bil = (jnp.dot(hi, sel, preferred_element_type=jnp.float32)
           + jnp.dot(lo, sel, preferred_element_type=jnp.float32))  # (TB, Kp)

    # --- Linear term over concat([e1, e2]) (no in-kernel concat) ------------
    lin = (jnp.dot(e1, wu1_ref[...], preferred_element_type=jnp.float32)
           + jnp.dot(e2, wu2_ref[...], preferred_element_type=jnp.float32)
           + b_ref[...])                               # (TB, Kp)  f32

    # Single lane-dense (TB, Kp) store; Kp is a multiple of 128.
    o_ref[...] = jnp.tanh(bil + lin)


# ----------------------------------------------------------------------------
# Wrapper: streaming over batch tiles with resident weights.
# ----------------------------------------------------------------------------
def ntn_forward(e1, e2, params, *, block_b=256):
    """params: w_bil (D, K*D) bf16, sel (K*D, Kp) bf16, wu1/wu2 (D, Kp) bf16,
    b (1, Kp) f32.  Returns (B, K) float32."""
    b, d = e1.shape
    kd = params["w_bil"].shape[-1]
    k = kd // d
    kp = params["b"].shape[-1]

    # bf16 inputs halve streamed HBM traffic; MXU still accumulates in f32.
    e1 = e1.astype(jnp.bfloat16)
    e2 = e2.astype(jnp.bfloat16)

    # Pad batch only to a multiple of 8 sublanes (at most 7 rows); ragged last
    # tiles are handled by the cdiv grid (no full repack of large inputs).
    bp = _round_up(b, 8)
    if bp != b:
        e1 = jnp.pad(e1, ((0, bp - b), (0, 0)))
        e2 = jnp.pad(e2, ((0, bp - b), (0, 0)))
    tb = min(_round_up(block_b, 8), bp)
    grid = (pl.cdiv(bp, tb),)

    # Per-core VMEM budget: resident weights + double-buffered I/O slabs +
    # in-flight intermediates; clamp to [32 MiB, 64 MiB] (v7x physical cap).
    weight_bytes = (d * kd + kd * kp + 2 * d * kp) * 2 + kp * 4
    io_bytes = 2 * (2 * tb * d * 2) + 2 * tb * kp * 4
    inter_bytes = tb * kd * (4 + 4 + 2 + 2 + 2)        # t, prod, hi, lo, e2_rep
    need = weight_bytes + io_bytes + inter_bytes
    vmem_limit = int(min(64 * 1024 * 1024, max(32 * 1024 * 1024, 2 * need)))

    out = pl.pallas_call(
        functools.partial(_ntn_kernel, out_dim=k),
        out_shape=jax.ShapeDtypeStruct((bp, kp), jnp.float32),
        grid_spec=pltpu.PrefetchScalarGridSpec(
            num_scalar_prefetch=0,
            grid=grid,
            in_specs=[
                pl.BlockSpec((tb, d), lambda i: (i, 0)),    # e1 row slab
                pl.BlockSpec((tb, d), lambda i: (i, 0)),    # e2 row slab
                pl.BlockSpec((d, kd), lambda i: (0, 0)),    # bilinear weight (resident)
                pl.BlockSpec((kd, kp), lambda i: (0, 0)),   # block-diag selector
                pl.BlockSpec((d, kp), lambda i: (0, 0)),    # linear weight, e1 half
                pl.BlockSpec((d, kp), lambda i: (0, 0)),    # linear weight, e2 half
                pl.BlockSpec((1, kp), lambda i: (0, 0)),    # linear bias
            ],
            out_specs=pl.BlockSpec((tb, kp), lambda i: (i, 0)),
        ),
        compiler_params=pltpu.CompilerParams(
            dimension_semantics=("parallel",),          # megacore-shard batch axis
            vmem_limit_bytes=vmem_limit,
        ),
    )(e1, e2, params["w_bil"], params["sel"], params["wu1"], params["wu2"],
      params["b"])
    return out[:b, :k]


# ----------------------------------------------------------------------------
# Parameter construction (shapes follow torch nn.Bilinear / nn.Linear).
# ----------------------------------------------------------------------------
def init_params(key, input_dim, output_dim):
    kw, ku, kb = jax.random.split(key, 3)
    # torch nn.Bilinear weight: (out, in1, in2); nn.Linear weight: (out, 2*in).
    w_bilinear = 0.2 * jax.random.normal(kw, (output_dim, input_dim, input_dim),
                                         jnp.float32)
    u_weight = 0.2 * jax.random.normal(ku, (output_dim, 2 * input_dim),
                                       jnp.float32)
    u_bias = 0.1 * jax.random.normal(kb, (output_dim,), jnp.float32)

    d, k = input_dim, output_dim
    kp = _round_up(k, 128)     # lane-dense output / full-width MXU matmuls

    # Kernel-friendly flattening:  w_bil[i, k*D + j] = W[k, i, j].
    w_bil = jnp.transpose(w_bilinear, (1, 0, 2)).reshape(d, k * d)

    # Block-diagonal 0/1 selector: sel[k*D + j, k] = 1 (padded columns zero).
    rows_k = jnp.arange(k * d) // d
    sel = (rows_k[:, None] == jnp.arange(kp)[None, :]).astype(jnp.bfloat16)

    def pad_cols(x):
        return jnp.pad(x, ((0, 0), (0, kp - k)))

    params = {
        "w_bil": w_bil.astype(jnp.bfloat16),            # (D, K*D)
        "sel": sel,                                     # (K*D, Kp)
        "wu1": pad_cols(u_weight[:, :d].T).astype(jnp.bfloat16),  # (D, Kp)
        "wu2": pad_cols(u_weight[:, d:].T).astype(jnp.bfloat16),  # (D, Kp)
        "b": pad_cols(u_bias.reshape(1, k)),            # (1, Kp) f32
    }
    # Raw torch-layout tensors for the reference check.
    raw = {"w_bilinear": w_bilinear, "u_weight": u_weight, "u_bias": u_bias}
    return params, raw


# ----------------------------------------------------------------------------
# Pure-JAX reference (direct transcription of the PyTorch forward).
# ----------------------------------------------------------------------------
def _ntn_ref(e1, e2, w_bilinear, u_weight, u_bias):
    bil = jnp.einsum("bi,kij,bj->bk", e1, w_bilinear, e2,
                     precision=jax.lax.Precision.HIGHEST)
    cat = jnp.concatenate([e1, e2], axis=1)
    lin = jnp.dot(cat, u_weight.T,
                  precision=jax.lax.Precision.HIGHEST) + u_bias
    return jnp.tanh(bil + lin)


if __name__ == "__main__":
    # Small config: batch=16, input_dim=32, output_dim=16.
    B = 16
    INPUT_DIM = 32
    OUTPUT_DIM = 16

    root = jax.random.PRNGKey(0)
    k_e1, k_e2, k_params = jax.random.split(root, 3)

    e1 = jax.random.normal(k_e1, (B, INPUT_DIM), jnp.float32)
    e2 = jax.random.normal(k_e2, (B, INPUT_DIM), jnp.float32)

    params, raw = init_params(k_params, INPUT_DIM, OUTPUT_DIM)

    # block_b=8 -> grid of 2 batch tiles, exercising the pipelined grid path.
    out = jax.block_until_ready(ntn_forward(e1, e2, params, block_b=8))
    assert out.shape == (B, OUTPUT_DIM)

    # Matched-precision reference: operands rounded to bf16 exactly as the
    # kernel's MXU inputs are (standard practice for bf16 kernels); the
    # kernel's f32 accumulation + hi/lo selector split keeps it within a tight
    # tolerance of this f32 HIGHEST-precision evaluation.
    bf = lambda x: x.astype(jnp.bfloat16).astype(jnp.float32)
    ref = jax.block_until_ready(
        _ntn_ref(bf(e1), bf(e2), bf(raw["w_bilinear"]), bf(raw["u_weight"]),
                 raw["u_bias"]))
    assert jnp.allclose(out, ref, rtol=2e-3, atol=2e-3), (
        "Pallas NTN output mismatch vs matched-precision reference")

    print("KERNEL_OK")
</pallas_src>

<mosaic_0001>
module attributes {stable_mosaic.version = 11 : i64} {
  func.func @_ntn_kernel(%arg0: i32, %arg1: memref<8x32xbf16, #tpu.memory_space<vmem>>, %arg2: memref<8x32xbf16, #tpu.memory_space<vmem>>, %arg3: memref<32x512xbf16, #tpu.memory_space<vmem>>, %arg4: memref<512x128xbf16, #tpu.memory_space<vmem>>, %arg5: memref<32x128xbf16, #tpu.memory_space<vmem>>, %arg6: memref<32x128xbf16, #tpu.memory_space<vmem>>, %arg7: memref<1x128xf32, #tpu.memory_space<vmem>>, %arg8: memref<8x128xf32, #tpu.memory_space<vmem>>) attributes {dimension_semantics = [#tpu.dimension_semantics<parallel>], iteration_bounds = array<i64: 2>, scalar_prefetch = 0 : i64, scratch_operands = 0 : i64, tpu.core_type = #tpu.core_type<tc>, window_params = [{transform_indices = @transform_0, window_bounds = array<i64: 8, 32>}, {transform_indices = @transform_1, window_bounds = array<i64: 8, 32>}, {pipeline_mode = #tpu.pipeline_mode<synchronous>, transform_indices = @transform_2, window_bounds = array<i64: 32, 512>}, {pipeline_mode = #tpu.pipeline_mode<synchronous>, transform_indices = @transform_3, window_bounds = array<i64: 512, 128>}, {pipeline_mode = #tpu.pipeline_mode<synchronous>, transform_indices = @transform_4, window_bounds = array<i64: 32, 128>}, {pipeline_mode = #tpu.pipeline_mode<synchronous>, transform_indices = @transform_5, window_bounds = array<i64: 32, 128>}, {pipeline_mode = #tpu.pipeline_mode<synchronous>, transform_indices = @transform_6, window_bounds = array<i64: 1, 128>}, {transform_indices = @transform_7, window_bounds = array<i64: 8, 128>}]} {
    %c0 = arith.constant 0 : index
    %c0_0 = arith.constant 0 : index
    %0 = vector.load %arg1[%c0, %c0_0] : memref<8x32xbf16, #tpu.memory_space<vmem>>, vector<8x32xbf16>
    %c0_1 = arith.constant 0 : index
    %c0_2 = arith.constant 0 : index
    %1 = vector.load %arg2[%c0_1, %c0_2] : memref<8x32xbf16, #tpu.memory_space<vmem>>, vector<8x32xbf16>
    %c0_3 = arith.constant 0 : index
    %c0_4 = arith.constant 0 : index
    %2 = vector.load %arg3[%c0_3, %c0_4] : memref<32x512xbf16, #tpu.memory_space<vmem>>, vector<32x512xbf16>
    %cst = arith.constant dense<0.000000e+00> : vector<8x512xf32>
    %3 = tpu.matmul %0, %2, %cst {dimension_numbers = #tpu.dot_dimension_numbers<[1], [0], [0], [1], [0, 0, 1, 1], [], []>} : vector<8x32xbf16>, vector<32x512xbf16>, vector<8x512xf32> -> vector<8x512xf32>
    %4 = tpu.concatenate %1, %1, %1, %1, %1, %1, %1, %1, %1, %1, %1, %1, %1, %1, %1, %1 in 1 : vector<8x32xbf16>, vector<8x32xbf16>, vector<8x32xbf16>, vector<8x32xbf16>, vector<8x32xbf16>, vector<8x32xbf16>, vector<8x32xbf16>, vector<8x32xbf16>, vector<8x32xbf16>, vector<8x32xbf16>, vector<8x32xbf16>, vector<8x32xbf16>, vector<8x32xbf16>, vector<8x32xbf16>, vector<8x32xbf16>, vector<8x32xbf16> -> vector<8x512xbf16>
    %5 = arith.extf %4 : vector<8x512xbf16> to vector<8x512xf32>
    %6 = arith.mulf %3, %5 : vector<8x512xf32>
    %7 = arith.truncf %6 : vector<8x512xf32> to vector<8x512xbf16>
    %8 = arith.extf %7 : vector<8x512xbf16> to vector<8x512xf32>
    %9 = arith.subf %6, %8 : vector<8x512xf32>
    %10 = arith.truncf %9 : vector<8x512xf32> to vector<8x512xbf16>
    %c0_5 = arith.constant 0 : index
    %c0_6 = arith.constant 0 : index
    %11 = vector.load %arg4[%c0_5, %c0_6] : memref<512x128xbf16, #tpu.memory_space<vmem>>, vector<512x128xbf16>
    %cst_7 = arith.constant dense<0.000000e+00> : vector<8x128xf32>
    %12 = tpu.matmul %7, %11, %cst_7 {dimension_numbers = #tpu.dot_dimension_numbers<[1], [0], [0], [1], [0, 0, 1, 1], [], []>} : vector<8x512xbf16>, vector<512x128xbf16>, vector<8x128xf32> -> vector<8x128xf32>
    %cst_8 = arith.constant dense<0.000000e+00> : vector<8x128xf32>
    %13 = tpu.matmul %10, %11, %cst_8 {dimension_numbers = #tpu.dot_dimension_numbers<[1], [0], [0], [1], [0, 0, 1, 1], [], []>} : vector<8x512xbf16>, vector<512x128xbf16>, vector<8x128xf32> -> vector<8x128xf32>
    %14 = arith.addf %12, %13 : vector<8x128xf32>
    %c0_9 = arith.constant 0 : index
    %c0_10 = arith.constant 0 : index
    %15 = vector.load %arg5[%c0_9, %c0_10] : memref<32x128xbf16, #tpu.memory_space<vmem>>, vector<32x128xbf16>
    %cst_11 = arith.constant dense<0.000000e+00> : vector<8x128xf32>
    %16 = tpu.matmul %0, %15, %cst_11 {dimension_numbers = #tpu.dot_dimension_numbers<[1], [0], [0], [1], [0, 0, 1, 1], [], []>} : vector<8x32xbf16>, vector<32x128xbf16>, vector<8x128xf32> -> vector<8x128xf32>
    %c0_12 = arith.constant 0 : index
    %c0_13 = arith.constant 0 : index
    %17 = vector.load %arg6[%c0_12, %c0_13] : memref<32x128xbf16, #tpu.memory_space<vmem>>, vector<32x128xbf16>
    %cst_14 = arith.constant dense<0.000000e+00> : vector<8x128xf32>
    %18 = tpu.matmul %1, %17, %cst_14 {dimension_numbers = #tpu.dot_dimension_numbers<[1], [0], [0], [1], [0, 0, 1, 1], [], []>} : vector<8x32xbf16>, vector<32x128xbf16>, vector<8x128xf32> -> vector<8x128xf32>
    %19 = arith.addf %16, %18 : vector<8x128xf32>
    %c0_15 = arith.constant 0 : index
    %c0_16 = arith.constant 0 : index
    %20 = vector.load %arg7[%c0_15, %c0_16] : memref<1x128xf32, #tpu.memory_space<vmem>>, vector<1x128xf32>
    %21 = vector.broadcast %20 : vector<1x128xf32> to vector<8x128xf32>
    %22 = arith.addf %19, %21 : vector<8x128xf32>
    %23 = arith.addf %14, %22 : vector<8x128xf32>
    %24 = math.tanh %23 : vector<8x128xf32>
    %c0_17 = arith.constant 0 : index
    %c0_18 = arith.constant 0 : index
    %25 = vector.load %arg8[%c0_17, %c0_18] : memref<8x128xf32, #tpu.memory_space<vmem>>, vector<8x128xf32>
    tpu.vector_store %arg8[%c0_17, %c0_18], %24 {strides = array<i32>} : memref<8x128xf32, #tpu.memory_space<vmem>>, vector<8x128xf32>,
    return
  }
  func.func @transform_0(%arg0: i32) -> (i32, i32) {
    %c0_i32 = arith.constant 0 : i32
    %c0_i32_0 = arith.constant 0 : i32
    return %arg0, %c0_i32 : i32, i32
  }
  func.func @transform_1(%arg0: i32) -> (i32, i32) {
    %c0_i32 = arith.constant 0 : i32
    %c0_i32_0 = arith.constant 0 : i32
    return %arg0, %c0_i32 : i32, i32
  }
  func.func @transform_2(%arg0: i32) -> (i32, i32) {
    %c0_i32 = arith.constant 0 : i32
    %c0_i32_0 = arith.constant 0 : i32
    %c0_i32_1 = arith.constant 0 : i32
    return %c0_i32, %c0_i32_0 : i32, i32
  }
  func.func @transform_3(%arg0: i32) -> (i32, i32) {
    %c0_i32 = arith.constant 0 : i32
    %c0_i32_0 = arith.constant 0 : i32
    %c0_i32_1 = arith.constant 0 : i32
    return %c0_i32, %c0_i32_0 : i32, i32
  }
  func.func @transform_4(%arg0: i32) -> (i32, i32) {
    %c0_i32 = arith.constant 0 : i32
    %c0_i32_0 = arith.constant 0 : i32
    %c0_i32_1 = arith.constant 0 : i32
    return %c0_i32, %c0_i32_0 : i32, i32
  }
  func.func @transform_5(%arg0: i32) -> (i32, i32) {
    %c0_i32 = arith.constant 0 : i32
    %c0_i32_0 = arith.constant 0 : i32
    %c0_i32_1 = arith.constant 0 : i32
    return %c0_i32, %c0_i32_0 : i32, i32
  }
  func.func @transform_6(%arg0: i32) -> (i32, i32) {
    %c0_i32 = arith.constant 0 : i32
    %c0_i32_0 = arith.constant 0 : i32
    %c0_i32_1 = arith.constant 0 : i32
    return %c0_i32, %c0_i32_0 : i32, i32
  }
  func.func @transform_7(%arg0: i32) -> (i32, i32) {
    %c0_i32 = arith.constant 0 : i32
    %c0_i32_0 = arith.constant 0 : i32
    return %arg0, %c0_i32 : i32, i32
  }
}

</mosaic_0001>

<llo_original>
// kernel: tpu_custom_call.1
$region0: #{tpu_custom_call.1}
  #allocation0 [shape = 'u32[]', space=smem, size = 0x4, offset = 0x4, fixed_abs, tag = 'smem constant byte address 0x4 - core index']
  #allocation1 [shape = 'u32[144,128]{1,0:T(1,128)}', space=vmem, size = 0x12000, scoped, tag = 'internal scratch']
  %s0 = inlined_call_operand.hbm [shape: bf16[16,32], index: 0, kind: input, shape index: {}]
  %s1 = inlined_call_operand.hbm [shape: bf16[16,32], index: 1, kind: input, shape index: {}]
  %s2 = inlined_call_operand.hbm [shape: bf16[32,512], index: 2, kind: input, shape index: {}]
  %s3 = inlined_call_operand.hbm [shape: bf16[512,128], index: 3, kind: input, shape index: {}]
  %s4 = inlined_call_operand.hbm [shape: bf16[32,128], index: 4, kind: input, shape index: {}]
  %s5 = inlined_call_operand.vmem [shape: bf16[32,128], index: 5, kind: input, shape index: {}]
  %s6 = inlined_call_operand.vmem [shape: f32[1,128], index: 6, kind: input, shape index: {}]
  %s7 = inlined_call_operand.hbm [shape: f32[16,128], index: 7, kind: output, shape index: {}]
  %s8 = sld [smem:[#allocation0]]
  $region81: #{tpu_custom_call.1} parent=0
    _
  %s10 = ssub.s32 1, %s8
  %s11 = scalar_select 0, %s10, %s8
  $region1: #{tpu_custom_call.1} parent=0
    #allocation2 [shape = 'u8[4096]{0}', space=vmem, size = 0x1000, scoped, tag = 'input window, operand 0']
    #allocation3 [shape = 's32[2]{0}', space=sflag, size = 0x8, scoped, tag = 'scoped memory for tpu_custom_call.1']
    #allocation4 [shape = 's32[2]{0}', space=sflag, size = 0x8, scoped, tag = 'scoped memory for tpu_custom_call.1']
    #allocation5 [shape = 'u8[4096]{0}', space=vmem, size = 0x1000, scoped, tag = 'input window, operand 1']
    #allocation6 [shape = 's32[2]{0}', space=sflag, size = 0x8, scoped, tag = 'scoped memory for tpu_custom_call.1']
    #allocation7 [shape = 'u8[32768]{0}', space=vmem, size = 0x8000, scoped, tag = 'input window, operand 2, single buffered']
    #allocation8 [shape = 'u8[131072]{0}', space=vmem, size = 0x20000, scoped, tag = 'input window, operand 3, single buffered']
    #allocation9 [shape = 's32[1]{0}', space=sflag, size = 0x4, scoped, tag = 'scoped memory for tpu_custom_call.1']
    #allocation10 [shape = 'u8[8192]{0}', space=vmem, size = 0x2000, scoped, tag = 'input window, operand 4, single buffered']
    #allocation11 [shape = 'u8[8192]{0}', space=vmem, size = 0x2000, scoped, tag = 'output window, operand 0']
    %12 = vsyncpa [#allocation3], 0
    %s13 = scalar_lea.sflag [#allocation3], 1
    %14 = vsyncpa %s13, 0
    %15 = vsyncpa [#allocation6], 0
    %s16 = scalar_lea.sflag [#allocation6], 1
    %17 = vsyncpa %s16, 0
    %18 = vsyncpa [#allocation9], 0
    %19 = vsyncpa [#allocation4], 0
    %s20 = scalar_lea.sflag [#allocation4], 1
    %21 = vsyncpa %s20, 0
    loop: start=0, step=1, limit=4
    $region2: #{tpu_custom_call.1} parent=1 // loop_pre_header
      _
    $region3: #{tpu_custom_call.1} parent=1 // loop_header
      %s23 = sphi 0, %s27
      %p24 = scmp.ge.s32.totalorder %s23, 4
      %s33 = sphi 0, %s35
      %s36 = sphi 0, %s33
      %s37 = sphi 0, %s36
      %s53 = sphi 0, %s37
      %s59 = sphi 0, %s61
      %s62 = sphi 0, %s59
      %s63 = sphi 0, %s62
      %s79 = sphi 0, %s63
      %s83 = sphi 0, %s83
      %s85 = sphi 0, %s83
      %s86 = sphi 0, %s85
      %s100 = sphi 0, %s86
      %s104 = sphi 0, %s104
      %s106 = sphi 0, %s104
      %s107 = sphi 0, %s106
      %s121 = sphi 0, %s107
      %s125 = sphi 0, %s125
      %s127 = sphi 0, %s125
      %s128 = sphi 0, %s127
      %s142 = sphi 0, %s128
      %s146 = sphi 0, %s146
      %s148 = sphi 0, %s146
      %s149 = sphi 0, %s148
      %s163 = sphi 0, %s149
      %s167 = sphi 0, %s167
      %s169 = sphi 0, %s167
      %s170 = sphi 0, %s169
      %s184 = sphi 0, %s170
      %s190 = sphi 0, %s192
      %s193 = sphi 0, %s190
      %s194 = sphi 0, %s193
      %s210 = sphi 0, %s194
    $region4: #{tpu_custom_call.1} parent=1 // loop_header_branch
      %26 = sbr.rel (%p24) target = $region8
    $region5: #{tpu_custom_call.1} parent=1 // loop_body
      %s28 = ssub.s32 %s23, 1
      %s29 = ssub.s32 %s23, 2
      %s30 = sadd.s32 %s23, 1
      %s31 = ssub.s32 %s23, %s30
      %p32 = scmp.eq.s32.totalorder %s31, 0
      %s34 = sadd.s32 %s33, 1
      %s35 = scalar_select %p32, %s33, %s34
      %p38 = pneg %p32
      %p39 = scmp.eq.s32.totalorder %s23, 1
      %p40 = por %p38, %p39
      %p41 = scmp.ne.s32.totalorder %s33, %s36
      %p42 = scmp.eq.s32.totalorder %s23, 0
      %p43 = por %p41, %p42
      %p44 = scmp.ne.s32.totalorder %s33, %s36
      %p45 = scmp.eq.s32.totalorder %s28, 1
      %p46 = por %p44, %p45
      %p47 = scmp.ne.s32.totalorder %s36, %s37
      %p48 = scmp.eq.s32.totalorder %s28, 0
      %p49 = por %p47, %p48
      %p50 = scmp.ne.s32.totalorder %s36, %s37
      %p51 = scmp.eq.s32.totalorder %s29, 1
      %p52 = por %p50, %p51
      %p54 = scmp.ne.s32.totalorder %s37, %s53
      %p55 = scmp.eq.s32.totalorder %s29, 0
      %p56 = por %p54, %p55
      %s57 = ssub.s32 %s23, %s30
      %p58 = scmp.eq.s32.totalorder %s57, 0
      %s60 = sadd.s32 %s59, 1
      %s61 = scalar_select %p58, %s59, %s60
      %p64 = pneg %p58
      %p65 = scmp.eq.s32.totalorder %s23, 1
      %p66 = por %p64, %p65
      %p67 = scmp.ne.s32.totalorder %s59, %s62
      %p68 = scmp.eq.s32.totalorder %s23, 0
      %p69 = por %p67, %p68
      %p70 = scmp.ne.s32.totalorder %s59, %s62
      %p71 = scmp.eq.s32.totalorder %s28, 1
      %p72 = por %p70, %p71
      %p73 = scmp.ne.s32.totalorder %s62, %s63
      %p74 = scmp.eq.s32.totalorder %s28, 0
      %p75 = por %p73, %p74
      %p76 = scmp.ne.s32.totalorder %s62, %s63
      %p77 = scmp.eq.s32.totalorder %s29, 1
      %p78 = por %p76, %p77
      %p80 = scmp.ne.s32.totalorder %s63, %s79
      %p81 = scmp.eq.s32.totalorder %s29, 0
      %p82 = por %p80, %p81
      %s84 = sadd.s32 %s83, 1
      %p87 = scmp.eq.s32.totalorder %s23, 1
      %p88 = scmp.ne.s32.totalorder %s83, %s85
      %p89 = scmp.eq.s32.totalorder %s23, 0
      %p90 = por %p88, %p89
      %p91 = scmp.ne.s32.totalorder %s83, %s85
      %p92 = scmp.eq.s32.totalorder %s28, 1
      %p93 = por %p91, %p92
      %p94 = scmp.ne.s32.totalorder %s85, %s86
      %p95 = scmp.eq.s32.totalorder %s28, 0
      %p96 = por %p94, %p95
      %p97 = scmp.ne.s32.totalorder %s85, %s86
      %p98 = scmp.eq.s32.totalorder %s29, 1
      %p99 = por %p97, %p98
      %p101 = scmp.ne.s32.totalorder %s86, %s100
      %p102 = scmp.eq.s32.totalorder %s29, 0
      %p103 = por %p101, %p102
      %s105 = sadd.s32 %s104, 1
      %p108 = scmp.eq.s32.totalorder %s23, 1
      %p109 = scmp.ne.s32.totalorder %s104, %s106
      %p110 = scmp.eq.s32.totalorder %s23, 0
      %p111 = por %p109, %p110
      %p112 = scmp.ne.s32.totalorder %s104, %s106
      %p113 = scmp.eq.s32.totalorder %s28, 1
      %p114 = por %p112, %p113
      %p115 = scmp.ne.s32.totalorder %s106, %s107
      %p116 = scmp.eq.s32.totalorder %s28, 0
      %p117 = por %p115, %p116
      %p118 = scmp.ne.s32.totalorder %s106, %s107
      %p119 = scmp.eq.s32.totalorder %s29, 1
      %p120 = por %p118, %p119
      %p122 = scmp.ne.s32.totalorder %s107, %s121
      %p123 = scmp.eq.s32.totalorder %s29, 0
      %p124 = por %p122, %p123
      %s126 = sadd.s32 %s125, 1
      %p129 = scmp.eq.s32.totalorder %s23, 1
      %p130 = scmp.ne.s32.totalorder %s125, %s127
      %p131 = scmp.eq.s32.totalorder %s23, 0
      %p132 = por %p130, %p131
      %p133 = scmp.ne.s32.totalorder %s125, %s127
      %p134 = scmp.eq.s32.totalorder %s28, 1
      %p135 = por %p133, %p134
      %p136 = scmp.ne.s32.totalorder %s127, %s128
      %p137 = scmp.eq.s32.totalorder %s28, 0
      %p138 = por %p136, %p137
      %p139 = scmp.ne.s32.totalorder %s127, %s128
      %p140 = scmp.eq.s32.totalorder %s29, 1
      %p141 = por %p139, %p140
      %p143 = scmp.ne.s32.totalorder %s128, %s142
      %p144 = scmp.eq.s32.totalorder %s29, 0
      %p145 = por %p143, %p144
      %s147 = sadd.s32 %s146, 1
      %p150 = scmp.eq.s32.totalorder %s23, 1
      %p151 = scmp.ne.s32.totalorder %s146, %s148
      %p152 = scmp.eq.s32.totalorder %s23, 0
      %p153 = por %p151, %p152
      %p154 = scmp.ne.s32.totalorder %s146, %s148
      %p155 = scmp.eq.s32.totalorder %s28, 1
      %p156 = por %p154, %p155
      %p157 = scmp.ne.s32.totalorder %s148, %s149
      %p158 = scmp.eq.s32.totalorder %s28, 0
      %p159 = por %p157, %p158
      %p160 = scmp.ne.s32.totalorder %s148, %s149
      %p161 = scmp.eq.s32.totalorder %s29, 1
      %p162 = por %p160, %p161
      %p164 = scmp.ne.s32.totalorder %s149, %s163
      %p165 = scmp.eq.s32.totalorder %s29, 0
      %p166 = por %p164, %p165
      %s168 = sadd.s32 %s167, 1
      %p171 = scmp.eq.s32.totalorder %s23, 1
      %p172 = scmp.ne.s32.totalorder %s167, %s169
      %p173 = scmp.eq.s32.totalorder %s23, 0
      %p174 = por %p172, %p173
      %p175 = scmp.ne.s32.totalorder %s167, %s169
      %p176 = scmp.eq.s32.totalorder %s28, 1
      %p177 = por %p175, %p176
      %p178 = scmp.ne.s32.totalorder %s169, %s170
      %p179 = scmp.eq.s32.totalorder %s28, 0
      %p180 = por %p178, %p179
      %p181 = scmp.ne.s32.totalorder %s169, %s170
      %p182 = scmp.eq.s32.totalorder %s29, 1
      %p183 = por %p181, %p182
      %p185 = scmp.ne.s32.totalorder %s170, %s184
      %p186 = scmp.eq.s32.totalorder %s29, 0
      %p187 = por %p185, %p186
      %s188 = ssub.s32 %s23, %s30
      %p189 = scmp.eq.s32.totalorder %s188, 0
      %s191 = sadd.s32 %s190, 1
      %s192 = scalar_select %p189, %s190, %s191
      %p195 = pneg %p189
      %p196 = scmp.eq.s32.totalorder %s23, 1
      %p197 = por %p195, %p196
      %p198 = scmp.ne.s32.totalorder %s190, %s193
      %p199 = scmp.eq.s32.totalorder %s23, 0
      %p200 = por %p198, %p199
      %p201 = scmp.ne.s32.totalorder %s190, %s193
      %p202 = scmp.eq.s32.totalorder %s28, 1
      %p203 = por %p201, %p202
      %p204 = scmp.ne.s32.totalorder %s193, %s194
      %p205 = scmp.eq.s32.totalorder %s28, 0
      %p206 = por %p204, %p205
      %p207 = scmp.ne.s32.totalorder %s193, %s194
      %p208 = scmp.eq.s32.totalorder %s29, 1
      %p209 = por %p207, %p208
      %p211 = scmp.ne.s32.totalorder %s194, %s210
      %p212 = scmp.eq.s32.totalorder %s29, 0
      %p213 = por %p211, %p212
      %p214 = scmp.le.s32.totalorder 1, %s23
      %p215 = scmp.lt.s32.totalorder %s23, 3
      %p216 = pnand %p214, %p215
      %p217 = pneg %p216
      // Predicated region
      $region9: #{tpu_custom_call.1} parent=5 // pred_check
        _
      $region10: #{tpu_custom_call.1} parent=5 // pred_check_branch
        %219 = sbr.rel (%p216) target = $region12
      $region11: #{tpu_custom_call.1} parent=5 // pred_region
        %s220 = ssub.s32 %s23, 1
        // Predicated region
        $region13: #{tpu_custom_call.1} parent=11 // pred_check
          %p221 = pneg %p96
        $region14: #{tpu_custom_call.1} parent=11 // pred_check_branch
          %223 = sbr.rel (%p221) target = $region16
        $region15: #{tpu_custom_call.1} parent=11 // pred_region
          %s225 = ssub.s32 1024, 1024
          %226 = vsyncadd [#allocation6], %s225
          %s227 = sshll.u32 [#allocation7], 4
          %s228 = int_to_ptr.vmem [resolvable:$true] %s227
          %233 = dma.hbm_to_vmem [thread:$0]  %s2, 1024, %s228, [#allocation6], 256, 256, 16
        $region16: #{tpu_custom_call.1} parent=11 // pred_fallthru
          _
        // Predicated region
        $region17: #{tpu_custom_call.1} parent=11 // pred_check
          %p234 = pneg %p117
        $region18: #{tpu_custom_call.1} parent=11 // pred_check_branch
          %236 = sbr.rel (%p234) target = $region20
        $region19: #{tpu_custom_call.1} parent=11 // pred_region
          %s238 = ssub.s32 4096, 4096
          %239 = vsyncadd [#allocation9], %s238
          %s240 = sshll.u32 [#allocation8], 4
          %s241 = int_to_ptr.vmem [resolvable:$true] %s240
          %246 = dma.hbm_to_vmem [thread:$0]  %s3, 4096, %s241, [#allocation9], 64, 64, 4
        $region20: #{tpu_custom_call.1} parent=11 // pred_fallthru
          _
        // Predicated region
        $region21: #{tpu_custom_call.1} parent=11 // pred_check
          %p247 = pneg %p138
        $region22: #{tpu_custom_call.1} parent=11 // pred_check_branch
          %249 = sbr.rel (%p247) target = $region24
        $region23: #{tpu_custom_call.1} parent=11 // pred_region
          %s251 = ssub.s32 256, 256
          %252 = vsyncadd [#allocation9], %s251
          %s253 = sshll.u32 [#allocation10], 4
          %s254 = int_to_ptr.vmem [resolvable:$true] %s253
          %259 = dma.hbm_to_vmem [thread:$0]  %s4, 256, %s254, [#allocation9], 64, 64, 4
        $region24: #{tpu_custom_call.1} parent=11 // pred_fallthru
          _
        // Predicated region
        $region25: #{tpu_custom_call.1} parent=11 // pred_check
          %p260 = pneg %p159
        $region26: #{tpu_custom_call.1} parent=11 // pred_check_branch
          %262 = sbr.rel (%p260) target = $region28
        $region27: #{tpu_custom_call.1} parent=11 // pred_region
          _
        $region28: #{tpu_custom_call.1} parent=11 // pred_fallthru
          _
        // Predicated region
        $region29: #{tpu_custom_call.1} parent=11 // pred_check
          %p263 = pneg %p180
        $region30: #{tpu_custom_call.1} parent=11 // pred_check_branch
          %265 = sbr.rel (%p263) target = $region32
        $region31: #{tpu_custom_call.1} parent=11 // pred_region
          _
        $region32: #{tpu_custom_call.1} parent=11 // pred_fallthru
          _
      $region12: #{tpu_custom_call.1} parent=5 // pred_fallthru
        _
      %p266 = scmp.lt.s32.totalorder %s23, 2
      // Predicated region
      $region33: #{tpu_custom_call.1} parent=5 // pred_check
        %p267 = pneg %p266
      $region34: #{tpu_custom_call.1} parent=5 // pred_check_branch
        %269 = sbr.rel (%p267) target = $region36
      $region35: #{tpu_custom_call.1} parent=5 // pred_region
        // Predicated region
        $region37: #{tpu_custom_call.1} parent=35 // pred_check
          %p270 = pneg %p43
        $region38: #{tpu_custom_call.1} parent=35 // pred_check_branch
          %272 = sbr.rel (%p270) target = $region40
        $region39: #{tpu_custom_call.1} parent=35 // pred_region
          %s273 = sand.u32 %s33, 1
          %s274 = scalar_lea.sflag [#allocation3], %s273
          %s275 = sand.u32 %s33, 1
          %s276 = smul.addr %s275, 4
          %s277 = scalar_lea.vmem [#allocation2], %s276
          %s279 = ssub.s32 64, 64
          %280 = vsyncadd %s274, %s279
          %s281 = smul.addr %s23, 64
          %s282 = scalar_lea.hbm %s0, %s281
          %s284 = sshll.u32 %s277, 4
          %s285 = int_to_ptr.vmem [resolvable:$true] %s284
          %287 = dma.hbm_to_vmem [thread:$0]  %s282, 64, %s285, %s274
        $region40: #{tpu_custom_call.1} parent=35 // pred_fallthru
          _
        // Predicated region
        $region41: #{tpu_custom_call.1} parent=35 // pred_check
          %p288 = pneg %p69
        $region42: #{tpu_custom_call.1} parent=35 // pred_check_branch
          %290 = sbr.rel (%p288) target = $region44
        $region43: #{tpu_custom_call.1} parent=35 // pred_region
          %s291 = sand.u32 %s23, 1
          %s292 = scalar_lea.sflag [#allocation6], %s291
          %s293 = sand.u32 %s59, 1
          %s294 = smul.addr %s293, 4
          %s295 = scalar_lea.vmem [#allocation5], %s294
          %s297 = ssub.s32 64, 64
          %298 = vsyncadd %s292, %s297
          %s299 = smul.addr %s23, 64
          %s300 = scalar_lea.hbm %s1, %s299
          %s302 = sshll.u32 %s295, 4
          %s303 = int_to_ptr.vmem [resolvable:$true] %s302
          %305 = dma.hbm_to_vmem [thread:$0]  %s300, 64, %s303, %s292
        $region44: #{tpu_custom_call.1} parent=35 // pred_fallthru
          _
      $region36: #{tpu_custom_call.1} parent=5 // pred_fallthru
        _
      %p306 = scmp.le.s32.totalorder 1, %s23
      %p307 = scmp.lt.s32.totalorder %s23, 3
      %p308 = pnand %p306, %p307
      %p309 = pneg %p308
      // Predicated region
      $region45: #{tpu_custom_call.1} parent=5 // pred_check
        _
      $region46: #{tpu_custom_call.1} parent=5 // pred_check_branch
        %311 = sbr.rel (%p308) target = $region48
      $region47: #{tpu_custom_call.1} parent=5 // pred_region
        %s312 = ssub.s32 %s23, 1
        %s313 = sand.u32 %s36, 1
        %s314 = scalar_lea.sflag [#allocation3], %s313
        %s315 = sand.u32 %s36, 1
        %s316 = smul.addr %s315, 4
        %s317 = scalar_lea.vmem [#allocation2], %s316
        // Predicated region
        $region49: #{tpu_custom_call.1} parent=47 // pred_check
          %p318 = pneg %p49
        $region50: #{tpu_custom_call.1} parent=47 // pred_check_branch
          %320 = sbr.rel (%p318) target = $region52
        $region51: #{tpu_custom_call.1} parent=47 // pred_region
          %321 = dma.done %s314, 64
        $region52: #{tpu_custom_call.1} parent=47 // pred_fallthru
          _
        %s322 = sand.u32 %s28, 1
        %s323 = scalar_lea.sflag [#allocation6], %s322
        %s324 = sand.u32 %s62, 1
        %s325 = smul.addr %s324, 4
        %s326 = scalar_lea.vmem [#allocation5], %s325
        // Predicated region
        $region53: #{tpu_custom_call.1} parent=47 // pred_check
          %p327 = pneg %p75
        $region54: #{tpu_custom_call.1} parent=47 // pred_check_branch
          %329 = sbr.rel (%p327) target = $region56
        $region55: #{tpu_custom_call.1} parent=47 // pred_region
          %330 = dma.done %s323, 64
        $region56: #{tpu_custom_call.1} parent=47 // pred_fallthru
          _
        // Predicated region
        $region57: #{tpu_custom_call.1} parent=47 // pred_check
          %p331 = pneg %p96
        $region58: #{tpu_custom_call.1} parent=47 // pred_check_branch
          %333 = sbr.rel (%p331) target = $region60
        $region59: #{tpu_custom_call.1} parent=47 // pred_region
          %334 = dma.done [#allocation6], 1024
        $region60: #{tpu_custom_call.1} parent=47 // pred_fallthru
          _
        // Predicated region
        $region61: #{tpu_custom_call.1} parent=47 // pred_check
          %p335 = pneg %p117
        $region62: #{tpu_custom_call.1} parent=47 // pred_check_branch
          %337 = sbr.rel (%p335) target = $region64
        $region63: #{tpu_custom_call.1} parent=47 // pred_region
          %338 = dma.done [#allocation9], 4096
        $region64: #{tpu_custom_call.1} parent=47 // pred_fallthru
          _
        // Predicated region
        $region65: #{tpu_custom_call.1} parent=47 // pred_check
          %p339 = pneg %p138
        $region66: #{tpu_custom_call.1} parent=47 // pred_check_branch
          %341 = sbr.rel (%p339) target = $region68
        $region67: #{tpu_custom_call.1} parent=47 // pred_region
          %342 = dma.done [#allocation9], 256
        $region68: #{tpu_custom_call.1} parent=47 // pred_fallthru
          _
        %s343 = sand.u32 %s36, 1
        %s344 = scalar_lea.sflag [#allocation3], %s343
        %s345 = sand.u32 %s36, 1
        %s346 = smul.addr %s345, 4
        %s347 = scalar_lea.vmem [#allocation2], %s346
        %p348 = pneg %p49
        %p349 = pneg %p46
        %s350 = sand.u32 %s28, 1
        %s351 = scalar_lea.sflag [#allocation6], %s350
        %s352 = sand.u32 %s62, 1
        %s353 = smul.addr %s352, 4
        %s354 = scalar_lea.vmem [#allocation5], %s353
        %p355 = pneg %p75
        %p356 = pneg %p72
        %p357 = pneg %p96
        %p358 = pneg %p93
        %p359 = pneg %p117
        %p360 = pneg %p114
        %p361 = pneg %p138
        %p362 = pneg %p135
        %p363 = pneg %p159
        %p364 = pneg %p156
        %p365 = pneg %p180
        %p366 = pneg %p177
        %p367 = pneg %p206
        %p368 = pneg %p203
        %s369 = sand.u32 %s193, 1
        %s370 = scalar_lea.sflag [#allocation4], %s369
        %s371 = sand.u32 %s193, 1
        %s372 = smul.addr %s371, 8
        %s373 = scalar_lea.vmem [#allocation11], %s372
        %v375 = vld [vmem:[%s317] sm:$0xf]
        %v376 = vld [vmem:[%s326] sm:$0xf]
        %v377 = vld [vmem:[#allocation7] sm:$0xff]
        %v378 = vld [vmem:[#allocation7 + $0x8] sm:$0xff]
        %v379 = vld [vmem:[#allocation7 + $0x10] sm:$0xff]
        %v380 = vld [vmem:[#allocation7 + $0x18] sm:$0xff]
        %v381 = vld [vmem:[#allocation7 + $0x20] sm:$0xff]
        %v382 = vld [vmem:[#allocation7 + $0x28] sm:$0xff]
        %v383 = vld [vmem:[#allocation7 + $0x30] sm:$0xff]
        %v384 = vld [vmem:[#allocation7 + $0x38] sm:$0xff]
        %v393 = vunpack.c.l.b16 %v377
        %v394 = vunpack.c.h.b16 %v377
        %v395 = vunpack.c.l.b16 %v378
        %v396 = vunpack.c.h.b16 %v378
        %v397 = vunpack.c.l.b16 %v379
        %v398 = vunpack.c.h.b16 %v379
        %v399 = vunpack.c.l.b16 %v380
        %v400 = vunpack.c.h.b16 %v380
        %v401 = vunpack.c.l.b16 %v381
        %v402 = vunpack.c.h.b16 %v381
        %v403 = vunpack.c.l.b16 %v382
        %v404 = vunpack.c.h.b16 %v382
        %v405 = vunpack.c.l.b16 %v383
        %v406 = vunpack.c.h.b16 %v383
        %v407 = vunpack.c.l.b16 %v384
        %v408 = vunpack.c.h.b16 %v384
        %v409 = vpack.c.b16 %v397, %v393
        %v410 = vpack.c.b16 %v398, %v394
        %v411 = vpack.c.b16 %v399, %v395
        %v412 = vpack.c.b16 %v400, %v396
        %v413 = vpack.c.b16 %v405, %v401
        %v414 = vpack.c.b16 %v406, %v402
        %v415 = vpack.c.b16 %v407, %v403
        %v416 = vpack.c.b16 %v408, %v404
        %vm425 = vcmask 261120
        %v427 = vsel %vm425, %v375, 0
        %429 = vmatprep.subr.bf16.mxu0 %v410
        %430 = vmatpush1.bf16.msra.mxu0 %v409
        %431 = vmatprep.subr.bf16.mxu0 %v414
        %432 = vmatpush1.bf16.msra.mxu0 %v413
        %433 = vmatprep.subr.bf16.mxu0 0
        %434 = vmatpush1.bf16.msra.mxu0 0
        %435 = vmatprep.subr.bf16.mxu0 0
        %436 = vmatpush1.bf16.msra.mxu0 0
        %437 = vmatprep.subr.bf16.mxu0 0
        %438 = vmatpush1.bf16.msra.mxu0 0
        %439 = vmatprep.subr.bf16.mxu0 0
        %440 = vmatpush1.bf16.msra.mxu0 0
        %441 = vmatprep.subr.bf16.mxu0 0
        %442 = vmatpush1.bf16.msra.mxu0 0
        %443 = vmatprep.subr.bf16.mxu0 0
        %444 = vmatpush1.bf16.msra.mxu0 0
        %445 = vmatprep.subr.bf16.mxu0 0
        %446 = vmatpush1.bf16.msra.mxu0 0
        %447 = vmatprep.subr.bf16.mxu0 0
        %448 = vmatpush1.bf16.msra.mxu0 0
        %449 = vmatprep.subr.bf16.mxu0 0
        %450 = vmatpush1.bf16.msra.mxu0 0
        %451 = vmatprep.subr.bf16.mxu0 0
        %452 = vmatpush1.bf16.msra.mxu0 0
        %453 = vmatprep.subr.bf16.mxu0 0
        %454 = vmatpush1.bf16.msra.mxu0 0
        %455 = vmatprep.subr.bf16.mxu0 0
        %456 = vmatpush1.bf16.msra.mxu0 0
        %457 = vmatprep.subr.bf16.mxu0 0
        %458 = vmatpush1.bf16.msra.mxu0 0
        %459 = vmatprep.subr.bf16.mxu0 0
        %460 = vmatpush1.bf16.msra.mxu0 0
        %461 = vmatprep.mubr.bf16.mxu0 0
        %462 = vmatmul.mubr.bf16.gmra.mrb[0].mxu0 %v427
        %v463 = vpop.f32.mrb[0].mxu0
        %v464 = vadd.f32 0.0, %v463
        %v465 = vpop.f32.mrb[0].mxu0
        %v466 = vadd.f32 0.0, %v465
        %v467 = vpop.f32.mrb[0].mxu0
        %v468 = vpop.f32.mrb[0].mxu0
        %469 = vdwg.mxu0
        %470 = vmatprep.subr.bf16.mxu0 %v412
        %471 = vmatpush1.bf16.msra.mxu0 %v411
        %472 = vmatprep.subr.bf16.mxu0 %v416
        %473 = vmatpush1.bf16.msra.mxu0 %v415
        %474 = vmatprep.subr.bf16.mxu0 0
        %475 = vmatpush1.bf16.msra.mxu0 0
        %476 = vmatprep.subr.bf16.mxu0 0
        %477 = vmatpush1.bf16.msra.mxu0 0
        %478 = vmatprep.subr.bf16.mxu0 0
        %479 = vmatpush1.bf16.msra.mxu0 0
        %480 = vmatprep.subr.bf16.mxu0 0
        %481 = vmatpush1.bf16.msra.mxu0 0
        %482 = vmatprep.subr.bf16.mxu0 0
        %483 = vmatpush1.bf16.msra.mxu0 0
        %484 = vmatprep.subr.bf16.mxu0 0
        %485 = vmatpush1.bf16.msra.mxu0 0
        %486 = vmatprep.subr.bf16.mxu0 0
        %487 = vmatpush1.bf16.msra.mxu0 0
        %488 = vmatprep.subr.bf16.mxu0 0
        %489 = vmatpush1.bf16.msra.mxu0 0
        %490 = vmatprep.subr.bf16.mxu0 0
        %491 = vmatpush1.bf16.msra.mxu0 0
        %492 = vmatprep.subr.bf16.mxu0 0
        %493 = vmatpush1.bf16.msra.mxu0 0
        %494 = vmatprep.subr.bf16.mxu0 0
        %495 = vmatpush1.bf16.msra.mxu0 0
        %496 = vmatprep.subr.bf16.mxu0 0
        %497 = vmatpush1.bf16.msra.mxu0 0
        %498 = vmatprep.subr.bf16.mxu0 0
        %499 = vmatpush1.bf16.msra.mxu0 0
        %500 = vmatprep.subr.bf16.mxu0 0
        %501 = vmatpush1.bf16.msra.mxu0 0
        %502 = vmatprep.mubr.bf16.mxu0 0
        %503 = vmatmul.mubr.bf16.gmra.mrb[0].mxu0 %v427
        %v504 = vpop.f32.mrb[0].mxu0
        %v505 = vadd.f32 0.0, %v504
        %v506 = vpop.f32.mrb[0].mxu0
        %v507 = vadd.f32 0.0, %v506
        %v508 = vpop.f32.mrb[0].mxu0
        %v509 = vpop.f32.mrb[0].mxu0
        %510 = vdwg.mxu0
        %v512 = vunpack.c.l.b16 %v376
        %v513 = vpack.c.b16 %v512, %v512
        %514 = vrot.lane.b32.xlu0 %v513, 32
        %v515 = vpop.permute.xlu0 %514
        %516 = vrot.lane.b32.xlu0 %v513, 64
        %v517 = vpop.permute.xlu0 %516
        %518 = vrot.lane.b32.xlu0 %v513, 96
        %v519 = vpop.permute.xlu0 %518
        %v522 = vsel %vm425, %v376, %v515
        %vm523 = vcmask 523264
        %v525 = vsel %vm523, %v522, %v517
        %vm526 = vcmask 785408
        %v528 = vsel %vm526, %v525, %v519
        %v530 = vunpack.c.l.bf16 %v528
        %v531 = vmul.f32 %v464, %v530
        %v532 = vmul.f32 %v466, %v530
        %v533 = vmul.f32 %v505, %v530
        %v534 = vmul.f32 %v507, %v530
        %v535 = vpack.c.bf16 %v531, %v531
        %v536 = vpack.c.bf16 %v532, %v532
        %v537 = vpack.c.bf16 %v533, %v533
        %v538 = vpack.c.bf16 %v534, %v534
        %v539 = vunpack.c.l.bf16 %v535
        %v540 = vunpack.c.l.bf16 %v536
        %v541 = vunpack.c.l.bf16 %v537
        %v542 = vunpack.c.l.bf16 %v538
        %v543 = vsub.f32 %v531, %v539
        %v544 = vsub.f32 %v532, %v540
        %v545 = vsub.f32 %v533, %v541
        %v546 = vsub.f32 %v534, %v542
        %v547 = vpack.c.bf16 %v543, %v543
        %v548 = vpack.c.bf16 %v544, %v544
        %v549 = vpack.c.bf16 %v545, %v545
        %v550 = vpack.c.bf16 %v546, %v546
        %v551 = vld [vmem:[#allocation8] sm:$0xf]
        %v552 = vld [vmem:[#allocation8 + $0x4] sm:$0xf]
        %v553 = vld [vmem:[#allocation8 + $0x8] sm:$0xf]
        %v554 = vld [vmem:[#allocation8 + $0xc] sm:$0xf]
        %v555 = vld [vmem:[#allocation8 + $0x10] sm:$0xf]
        %v556 = vld [vmem:[#allocation8 + $0x14] sm:$0xf]
        %v557 = vld [vmem:[#allocation8 + $0x18] sm:$0xf]
        %v558 = vld [vmem:[#allocation8 + $0x1c] sm:$0xf]
        %v559 = vld [vmem:[#allocation8 + $0x20] sm:$0xf]
        %v560 = vld [vmem:[#allocation8 + $0x24] sm:$0xf]
        %v561 = vld [vmem:[#allocation8 + $0x28] sm:$0xf]
        %v562 = vld [vmem:[#allocation8 + $0x2c] sm:$0xf]
        %v563 = vld [vmem:[#allocation8 + $0x30] sm:$0xf]
        %v564 = vld [vmem:[#allocation8 + $0x34] sm:$0xf]
        %v565 = vld [vmem:[#allocation8 + $0x38] sm:$0xf]
        %v566 = vld [vmem:[#allocation8 + $0x3c] sm:$0xf]
        %v567 = vld [vmem:[#allocation8 + $0x40] sm:$0xf]
        %v568 = vld [vmem:[#allocation8 + $0x44] sm:$0xf]
        %v569 = vld [vmem:[#allocation8 + $0x48] sm:$0xf]
        %v570 = vld [vmem:[#allocation8 + $0x4c] sm:$0xf]
        %v571 = vld [vmem:[#allocation8 + $0x50] sm:$0xf]
        %v572 = vld [vmem:[#allocation8 + $0x54] sm:$0xf]
        %v573 = vld [vmem:[#allocation8 + $0x58] sm:$0xf]
        %v574 = vld [vmem:[#allocation8 + $0x5c] sm:$0xf]
        %v575 = vld [vmem:[#allocation8 + $0x60] sm:$0xf]
        %v576 = vld [vmem:[#allocation8 + $0x64] sm:$0xf]
        %v577 = vld [vmem:[#allocation8 + $0x68] sm:$0xf]
        %v578 = vld [vmem:[#allocation8 + $0x6c] sm:$0xf]
        %v579 = vld [vmem:[#allocation8 + $0x70] sm:$0xf]
        %v580 = vld [vmem:[#allocation8 + $0x74] sm:$0xf]
        %v581 = vld [vmem:[#allocation8 + $0x78] sm:$0xf]
        %v582 = vld [vmem:[#allocation8 + $0x7c] sm:$0xf]
        %v583 = vld [vmem:[#allocation8 + $0x80] sm:$0xf]
        %v584 = vld [vmem:[#allocation8 + $0x84] sm:$0xf]
        %v585 = vld [vmem:[#allocation8 + $0x88] sm:$0xf]
        %v586 = vld [vmem:[#allocation8 + $0x8c] sm:$0xf]
        %v587 = vld [vmem:[#allocation8 + $0x90] sm:$0xf]
        %v588 = vld [vmem:[#allocation8 + $0x94] sm:$0xf]
        %v589 = vld [vmem:[#allocation8 + $0x98] sm:$0xf]
        %v590 = vld [vmem:[#allocation8 + $0x9c] sm:$0xf]
        %v591 = vld [vmem:[#allocation8 + $0xa0] sm:$0xf]
        %v592 = vld [vmem:[#allocation8 + $0xa4] sm:$0xf]
        %v593 = vld [vmem:[#allocation8 + $0xa8] sm:$0xf]
        %v594 = vld [vmem:[#allocation8 + $0xac] sm:$0xf]
        %v595 = vld [vmem:[#allocation8 + $0xb0] sm:$0xf]
        %v596 = vld [vmem:[#allocation8 + $0xb4] sm:$0xf]
        %v597 = vld [vmem:[#allocation8 + $0xb8] sm:$0xf]
        %v598 = vld [vmem:[#allocation8 + $0xbc] sm:$0xf]
        %v599 = vld [vmem:[#allocation8 + $0xc0] sm:$0xf]
        %v600 = vld [vmem:[#allocation8 + $0xc4] sm:$0xf]
        %v601 = vld [vmem:[#allocation8 + $0xc8] sm:$0xf]
        %v602 = vld [vmem:[#allocation8 + $0xcc] sm:$0xf]
        %v603 = vld [vmem:[#allocation8 + $0xd0] sm:$0xf]
        %v604 = vld [vmem:[#allocation8 + $0xd4] sm:$0xf]
        %v605 = vld [vmem:[#allocation8 + $0xd8] sm:$0xf]
        %v606 = vld [vmem:[#allocation8 + $0xdc] sm:$0xf]
        %v607 = vld [vmem:[#allocation8 + $0xe0] sm:$0xf]
        %v608 = vld [vmem:[#allocation8 + $0xe4] sm:$0xf]
        %v609 = vld [vmem:[#allocation8 + $0xe8] sm:$0xf]
        %v610 = vld [vmem:[#allocation8 + $0xec] sm:$0xf]
        %v611 = vld [vmem:[#allocation8 + $0xf0] sm:$0xf]
        %v612 = vld [vmem:[#allocation8 + $0xf4] sm:$0xf]
        %v613 = vld [vmem:[#allocation8 + $0xf8] sm:$0xf]
        %v614 = vld [vmem:[#allocation8 + $0xfc] sm:$0xf]
        %v679 = vunpack.c.l.b16 %v551
        %v680 = vunpack.c.l.b16 %v552
        %v681 = vunpack.c.l.b16 %v553
        %v682 = vunpack.c.l.b16 %v554
        %v683 = vunpack.c.l.b16 %v555
        %v684 = vunpack.c.l.b16 %v556
        %v685 = vunpack.c.l.b16 %v557
        %v686 = vunpack.c.l.b16 %v558
        %v687 = vunpack.c.l.b16 %v559
        %v688 = vunpack.c.l.b16 %v560
        %v689 = vunpack.c.l.b16 %v561
        %v690 = vunpack.c.l.b16 %v562
        %v691 = vunpack.c.l.b16 %v563
        %v692 = vunpack.c.l.b16 %v564
        %v693 = vunpack.c.l.b16 %v565
        %v694 = vunpack.c.l.b16 %v566
        %v695 = vunpack.c.l.b16 %v567
        %v696 = vunpack.c.l.b16 %v568
        %v697 = vunpack.c.l.b16 %v569
        %v698 = vunpack.c.l.b16 %v570
        %v699 = vunpack.c.l.b16 %v571
        %v700 = vunpack.c.l.b16 %v572
        %v701 = vunpack.c.l.b16 %v573
        %v702 = vunpack.c.l.b16 %v574
        %v703 = vunpack.c.l.b16 %v575
        %v704 = vunpack.c.l.b16 %v576
        %v705 = vunpack.c.l.b16 %v577
        %v706 = vunpack.c.l.b16 %v578
        %v707 = vunpack.c.l.b16 %v579
        %v708 = vunpack.c.l.b16 %v580
        %v709 = vunpack.c.l.b16 %v581
        %v710 = vunpack.c.l.b16 %v582
        %v711 = vunpack.c.l.b16 %v583
        %v712 = vunpack.c.l.b16 %v584
        %v713 = vunpack.c.l.b16 %v585
        %v714 = vunpack.c.l.b16 %v586
        %v715 = vunpack.c.l.b16 %v587
        %v716 = vunpack.c.l.b16 %v588
        %v717 = vunpack.c.l.b16 %v589
        %v718 = vunpack.c.l.b16 %v590
        %v719 = vunpack.c.l.b16 %v591
        %v720 = vunpack.c.l.b16 %v592
        %v721 = vunpack.c.l.b16 %v593
        %v722 = vunpack.c.l.b16 %v594
        %v723 = vunpack.c.l.b16 %v595
        %v724 = vunpack.c.l.b16 %v596
        %v725 = vunpack.c.l.b16 %v597
        %v726 = vunpack.c.l.b16 %v598
        %v727 = vunpack.c.l.b16 %v599
        %v728 = vunpack.c.l.b16 %v600
        %v729 = vunpack.c.l.b16 %v601
        %v730 = vunpack.c.l.b16 %v602
        %v731 = vunpack.c.l.b16 %v603
        %v732 = vunpack.c.l.b16 %v604
        %v733 = vunpack.c.l.b16 %v605
        %v734 = vunpack.c.l.b16 %v606
        %v735 = vunpack.c.l.b16 %v607
        %v736 = vunpack.c.l.b16 %v608
        %v737 = vunpack.c.l.b16 %v609
        %v738 = vunpack.c.l.b16 %v610
        %v739 = vunpack.c.l.b16 %v611
        %v740 = vunpack.c.l.b16 %v612
        %v741 = vunpack.c.l.b16 %v613
        %v742 = vunpack.c.l.b16 %v614
        %v743 = vpack.c.b16 %v680, %v679
        %v744 = vpack.c.b16 %v682, %v681
        %v745 = vpack.c.b16 %v684, %v683
        %v746 = vpack.c.b16 %v686, %v685
        %v747 = vpack.c.b16 %v688, %v687
        %v748 = vpack.c.b16 %v690, %v689
        %v749 = vpack.c.b16 %v692, %v691
        %v750 = vpack.c.b16 %v694, %v693
        %v751 = vpack.c.b16 %v696, %v695
        %v752 = vpack.c.b16 %v698, %v697
        %v753 = vpack.c.b16 %v700, %v699
        %v754 = vpack.c.b16 %v702, %v701
        %v755 = vpack.c.b16 %v704, %v703
        %v756 = vpack.c.b16 %v706, %v705
        %v757 = vpack.c.b16 %v708, %v707
        %v758 = vpack.c.b16 %v710, %v709
        %v759 = vpack.c.b16 %v712, %v711
        %v760 = vpack.c.b16 %v714, %v713
        %v761 = vpack.c.b16 %v716, %v715
        %v762 = vpack.c.b16 %v718, %v717
        %v763 = vpack.c.b16 %v720, %v719
        %v764 = vpack.c.b16 %v722, %v721
        %v765 = vpack.c.b16 %v724, %v723
        %v766 = vpack.c.b16 %v726, %v725
        %v767 = vpack.c.b16 %v728, %v727
        %v768 = vpack.c.b16 %v730, %v729
        %v769 = vpack.c.b16 %v732, %v731
        %v770 = vpack.c.b16 %v734, %v733
        %v771 = vpack.c.b16 %v736, %v735
        %v772 = vpack.c.b16 %v738, %v737
        %v773 = vpack.c.b16 %v740, %v739
        %v774 = vpack.c.b16 %v742, %v741
        %807 = vmatprep.subr.bf16.mxu0 0
        %808 = vmatpush1.bf16.msra.mxu0 %v743
        %809 = vmatprep.subr.bf16.mxu0 0
        %810 = vmatpush1.bf16.msra.mxu0 %v744
        %811 = vmatprep.subr.bf16.mxu0 0
        %812 = vmatpush1.bf16.msra.mxu0 %v745
        %813 = vmatprep.subr.bf16.mxu0 0
        %814 = vmatpush1.bf16.msra.mxu0 %v746
        %815 = vmatprep.subr.bf16.mxu0 0
        %816 = vmatpush1.bf16.msra.mxu0 %v747
        %817 = vmatprep.subr.bf16.mxu0 0
        %818 = vmatpush1.bf16.msra.mxu0 %v748
        %819 = vmatprep.subr.bf16.mxu0 0
        %820 = vmatpush1.bf16.msra.mxu0 %v749
        %821 = vmatprep.subr.bf16.mxu0 0
        %822 = vmatpush1.bf16.msra.mxu0 %v750
        %823 = vmatprep.subr.bf16.mxu0 0
        %824 = vmatpush1.bf16.msra.mxu0 %v751
        %825 = vmatprep.subr.bf16.mxu0 0
        %826 = vmatpush1.bf16.msra.mxu0 %v752
        %827 = vmatprep.subr.bf16.mxu0 0
        %828 = vmatpush1.bf16.msra.mxu0 %v753
        %829 = vmatprep.subr.bf16.mxu0 0
        %830 = vmatpush1.bf16.msra.mxu0 %v754
        %831 = vmatprep.subr.bf16.mxu0 0
        %832 = vmatpush1.bf16.msra.mxu0 %v755
        %833 = vmatprep.subr.bf16.mxu0 0
        %834 = vmatpush1.bf16.msra.mxu0 %v756
        %835 = vmatprep.subr.bf16.mxu0 0
        %836 = vmatpush1.bf16.msra.mxu0 %v757
        %837 = vmatprep.subr.bf16.mxu0 0
        %838 = vmatpush1.bf16.msra.mxu0 %v758
        %839 = vmatprep.mubr.bf16.mxu0 %v548
        %840 = vmatmul.mubr.bf16.gmra.mrb[0].mxu0 %v547
        %v841 = vpop.f32.mrb[0].mxu0
        %v842 = vadd.f32 0.0, %v841
        %v843 = vpop.f32.mrb[0].mxu0
        %v844 = vpop.f32.mrb[0].mxu0
        %v845 = vpop.f32.mrb[0].mxu0
        %846 = vdwg.mxu0
        %847 = vmatprep.subr.bf16.mxu0 0
        %848 = vmatpush1.bf16.msra.mxu0 %v759
        %849 = vmatprep.subr.bf16.mxu0 0
        %850 = vmatpush1.bf16.msra.mxu0 %v760
        %851 = vmatprep.subr.bf16.mxu0 0
        %852 = vmatpush1.bf16.msra.mxu0 %v761
        %853 = vmatprep.subr.bf16.mxu0 0
        %854 = vmatpush1.bf16.msra.mxu0 %v762
        %855 = vmatprep.subr.bf16.mxu0 0
        %856 = vmatpush1.bf16.msra.mxu0 %v763
        %857 = vmatprep.subr.bf16.mxu0 0
        %858 = vmatpush1.bf16.msra.mxu0 %v764
        %859 = vmatprep.subr.bf16.mxu0 0
        %860 = vmatpush1.bf16.msra.mxu0 %v765
        %861 = vmatprep.subr.bf16.mxu0 0
        %862 = vmatpush1.bf16.msra.mxu0 %v766
        %863 = vmatprep.subr.bf16.mxu0 0
        %864 = vmatpush1.bf16.msra.mxu0 %v767
        %865 = vmatprep.subr.bf16.mxu0 0
        %866 = vmatpush1.bf16.msra.mxu0 %v768
        %867 = vmatprep.subr.bf16.mxu0 0
        %868 = vmatpush1.bf16.msra.mxu0 %v769
        %869 = vmatprep.subr.bf16.mxu0 0
        %870 = vmatpush1.bf16.msra.mxu0 %v770
        %871 = vmatprep.subr.bf16.mxu0 0
        %872 = vmatpush1.bf16.msra.mxu0 %v771
        %873 = vmatprep.subr.bf16.mxu0 0
        %874 = vmatpush1.bf16.msra.mxu0 %v772
        %875 = vmatprep.subr.bf16.mxu0 0
        %876 = vmatpush1.bf16.msra.mxu0 %v773
        %877 = vmatprep.subr.bf16.mxu0 0
        %878 = vmatpush1.bf16.msra.mxu0 %v774
        %879 = vmatprep.mubr.bf16.mxu0 %v550
        %880 = vmatmul.mubr.bf16.gmra.mrb[0].mxu0 %v549
        %v881 = vpop.f32.mrb[0].mxu0
        %v882 = vadd.f32 %v842, %v881
        %v883 = vpop.f32.mrb[0].mxu0
        %v884 = vpop.f32.mrb[0].mxu0
        %v885 = vpop.f32.mrb[0].mxu0
        %886 = vdwg.mxu0
        %887 = vmatprep.subr.bf16.mxu0 0
        %888 = vmatpush1.bf16.msra.mxu0 %v743
        %889 = vmatprep.subr.bf16.mxu0 0
        %890 = vmatpush1.bf16.msra.mxu0 %v744
        %891 = vmatprep.subr.bf16.mxu0 0
        %892 = vmatpush1.bf16.msra.mxu0 %v745
        %893 = vmatprep.subr.bf16.mxu0 0
        %894 = vmatpush1.bf16.msra.mxu0 %v746
        %895 = vmatprep.subr.bf16.mxu0 0
        %896 = vmatpush1.bf16.msra.mxu0 %v747
        %897 = vmatprep.subr.bf16.mxu0 0
        %898 = vmatpush1.bf16.msra.mxu0 %v748
        %899 = vmatprep.subr.bf16.mxu0 0
        %900 = vmatpush1.bf16.msra.mxu0 %v749
        %901 = vmatprep.subr.bf16.mxu0 0
        %902 = vmatpush1.bf16.msra.mxu0 %v750
        %903 = vmatprep.subr.bf16.mxu0 0
        %904 = vmatpush1.bf16.msra.mxu0 %v751
        %905 = vmatprep.subr.bf16.mxu0 0
        %906 = vmatpush1.bf16.msra.mxu0 %v752
        %907 = vmatprep.subr.bf16.mxu0 0
        %908 = vmatpush1.bf16.msra.mxu0 %v753
        %909 = vmatprep.subr.bf16.mxu0 0
        %910 = vmatpush1.bf16.msra.mxu0 %v754
        %911 = vmatprep.subr.bf16.mxu0 0
        %912 = vmatpush1.bf16.msra.mxu0 %v755
        %913 = vmatprep.subr.bf16.mxu0 0
        %914 = vmatpush1.bf16.msra.mxu0 %v756
        %915 = vmatprep.subr.bf16.mxu0 0
        %916 = vmatpush1.bf16.msra.mxu0 %v757
        %917 = vmatprep.subr.bf16.mxu0 0
        %918 = vmatpush1.bf16.msra.mxu0 %v758
        %919 = vmatprep.mubr.bf16.mxu0 %v536
        %920 = vmatmul.mubr.bf16.gmra.mrb[0].mxu0 %v535
        %v921 = vpop.f32.mrb[0].mxu0
        %v922 = vadd.f32 %v882, %v921
        %v923 = vpop.f32.mrb[0].mxu0
        %v924 = vpop.f32.mrb[0].mxu0
        %v925 = vpop.f32.mrb[0].mxu0
        %926 = vdwg.mxu0
        %927 = vmatprep.subr.bf16.mxu0 0
        %928 = vmatpush1.bf16.msra.mxu0 %v759
        %929 = vmatprep.subr.bf16.mxu0 0
        %930 = vmatpush1.bf16.msra.mxu0 %v760
        %931 = vmatprep.subr.bf16.mxu0 0
        %932 = vmatpush1.bf16.msra.mxu0 %v761
        %933 = vmatprep.subr.bf16.mxu0 0
        %934 = vmatpush1.bf16.msra.mxu0 %v762
        %935 = vmatprep.subr.bf16.mxu0 0
        %936 = vmatpush1.bf16.msra.mxu0 %v763
        %937 = vmatprep.subr.bf16.mxu0 0
        %938 = vmatpush1.bf16.msra.mxu0 %v764
        %939 = vmatprep.subr.bf16.mxu0 0
        %940 = vmatpush1.bf16.msra.mxu0 %v765
        %941 = vmatprep.subr.bf16.mxu0 0
        %942 = vmatpush1.bf16.msra.mxu0 %v766
        %943 = vmatprep.subr.bf16.mxu0 0
        %944 = vmatpush1.bf16.msra.mxu0 %v767
        %945 = vmatprep.subr.bf16.mxu0 0
        %946 = vmatpush1.bf16.msra.mxu0 %v768
        %947 = vmatprep.subr.bf16.mxu0 0
        %948 = vmatpush1.bf16.msra.mxu0 %v769
        %949 = vmatprep.subr.bf16.mxu0 0
        %950 = vmatpush1.bf16.msra.mxu0 %v770
        %951 = vmatprep.subr.bf16.mxu0 0
        %952 = vmatpush1.bf16.msra.mxu0 %v771
        %953 = vmatprep.subr.bf16.mxu0 0
        %954 = vmatpush1.bf16.msra.mxu0 %v772
        %955 = vmatprep.subr.bf16.mxu0 0
        %956 = vmatpush1.bf16.msra.mxu0 %v773
        %957 = vmatprep.subr.bf16.mxu0 0
        %958 = vmatpush1.bf16.msra.mxu0 %v774
        %959 = vmatprep.mubr.bf16.mxu0 %v538
        %960 = vmatmul.mubr.bf16.gmra.mrb[0].mxu0 %v537
        %v961 = vpop.f32.mrb[0].mxu0
        %v962 = vadd.f32 %v922, %v961
        %v963 = vpop.f32.mrb[0].mxu0
        %v964 = vpop.f32.mrb[0].mxu0
        %v965 = vpop.f32.mrb[0].mxu0
        %966 = vdwg.mxu0
        %v967 = vld [vmem:[#allocation10] sm:$0xf]
        %v968 = vld [vmem:[#allocation10 + $0x4] sm:$0xf]
        %v969 = vld [vmem:[#allocation10 + $0x8] sm:$0xf]
        %v970 = vld [vmem:[#allocation10 + $0xc] sm:$0xf]
        %v971 = vld [vmem:[%s5] sm:$0xf]
        %v972 = vld [vmem:[%s5 + $0x4] sm:$0xf]
        %v973 = vld [vmem:[%s5 + $0x8] sm:$0xf]
        %v974 = vld [vmem:[%s5 + $0xc] sm:$0xf]
        %v979 = vunpack.c.l.b16 %v971
        %v980 = vunpack.c.l.b16 %v972
        %v981 = vunpack.c.l.b16 %v973
        %v982 = vunpack.c.l.b16 %v974
        %v983 = vpack.c.b16 %v980, %v979
        %v984 = vpack.c.b16 %v982, %v981
        %v987 = vsel %vm425, %v376, 0
        %989 = vmatprep.subr.bf16.mxu0 0
        %990 = vmatpush1.bf16.msra.mxu0 %v983
        %991 = vmatprep.subr.bf16.mxu0 0
        %992 = vmatpush1.bf16.msra.mxu0 %v984
        %993 = vmatprep.subr.bf16.mxu0 0
        %994 = vmatpush1.bf16.msra.mxu0 0
        %995 = vmatprep.subr.bf16.mxu0 0
        %996 = vmatpush1.bf16.msra.mxu0 0
        %997 = vmatprep.subr.bf16.mxu0 0
        %998 = vmatpush1.bf16.msra.mxu0 0
        %999 = vmatprep.subr.bf16.mxu0 0
        %1000 = vmatpush1.bf16.msra.mxu0 0
        %1001 = vmatprep.subr.bf16.mxu0 0
        %1002 = vmatpush1.bf16.msra.mxu0 0
        %1003 = vmatprep.subr.bf16.mxu0 0
        %1004 = vmatpush1.bf16.msra.mxu0 0
        %1005 = vmatprep.subr.bf16.mxu0 0
        %1006 = vmatpush1.bf16.msra.mxu0 0
        %1007 = vmatprep.subr.bf16.mxu0 0
        %1008 = vmatpush1.bf16.msra.mxu0 0
        %1009 = vmatprep.subr.bf16.mxu0 0
        %1010 = vmatpush1.bf16.msra.mxu0 0
        %1011 = vmatprep.subr.bf16.mxu0 0
        %1012 = vmatpush1.bf16.msra.mxu0 0
        %1013 = vmatprep.subr.bf16.mxu0 0
        %1014 = vmatpush1.bf16.msra.mxu0 0
        %1015 = vmatprep.subr.bf16.mxu0 0
        %1016 = vmatpush1.bf16.msra.mxu0 0
        %1017 = vmatprep.subr.bf16.mxu0 0
        %1018 = vmatpush1.bf16.msra.mxu0 0
        %1019 = vmatprep.subr.bf16.mxu0 0
        %1020 = vmatpush1.bf16.msra.mxu0 0
        %1021 = vmatprep.mubr.bf16.mxu0 0
        %1022 = vmatmul.mubr.bf16.gmra.mrb[0].mxu0 %v987
        %v1023 = vpop.f32.mrb[0].mxu0
        %v1024 = vadd.f32 0.0, %v1023
        %v1025 = vpop.f32.mrb[0].mxu0
        %v1026 = vpop.f32.mrb[0].mxu0
        %v1027 = vpop.f32.mrb[0].mxu0
        %1028 = vdwg.mxu0
        %v1033 = vunpack.c.l.b16 %v967
        %v1034 = vunpack.c.l.b16 %v968
        %v1035 = vunpack.c.l.b16 %v969
        %v1036 = vunpack.c.l.b16 %v970
        %v1037 = vpack.c.b16 %v1034, %v1033
        %v1038 = vpack.c.b16 %v1036, %v1035
        %1041 = vmatprep.subr.bf16.mxu0 0
        %1042 = vmatpush1.bf16.msra.mxu0 %v1037
        %1043 = vmatprep.subr.bf16.mxu0 0
        %1044 = vmatpush1.bf16.msra.mxu0 %v1038
        %1045 = vmatprep.subr.bf16.mxu0 0
        %1046 = vmatpush1.bf16.msra.mxu0 0
        %1047 = vmatprep.subr.bf16.mxu0 0
        %1048 = vmatpush1.bf16.msra.mxu0 0
        %1049 = vmatprep.subr.bf16.mxu0 0
        %1050 = vmatpush1.bf16.msra.mxu0 0
        %1051 = vmatprep.subr.bf16.mxu0 0
        %1052 = vmatpush1.bf16.msra.mxu0 0
        %1053 = vmatprep.subr.bf16.mxu0 0
        %1054 = vmatpush1.bf16.msra.mxu0 0
        %1055 = vmatprep.subr.bf16.mxu0 0
        %1056 = vmatpush1.bf16.msra.mxu0 0
        %1057 = vmatprep.subr.bf16.mxu0 0
        %1058 = vmatpush1.bf16.msra.mxu0 0
        %1059 = vmatprep.subr.bf16.mxu0 0
        %1060 = vmatpush1.bf16.msra.mxu0 0
        %1061 = vmatprep.subr.bf16.mxu0 0
        %1062 = vmatpush1.bf16.msra.mxu0 0
        %1063 = vmatprep.subr.bf16.mxu0 0
        %1064 = vmatpush1.bf16.msra.mxu0 0
        %1065 = vmatprep.subr.bf16.mxu0 0
        %1066 = vmatpush1.bf16.msra.mxu0 0
        %1067 = vmatprep.subr.bf16.mxu0 0
        %1068 = vmatpush1.bf16.msra.mxu0 0
        %1069 = vmatprep.subr.bf16.mxu0 0
        %1070 = vmatpush1.bf16.msra.mxu0 0
        %1071 = vmatprep.subr.bf16.mxu0 0
        %1072 = vmatpush1.bf16.msra.mxu0 0
        %1073 = vmatprep.mubr.bf16.mxu0 0
        %1074 = vmatmul.mubr.bf16.gmra.mrb[0].mxu0 %v427
        %v1075 = vpop.f32.mrb[0].mxu0
        %v1076 = vadd.f32 %v1024, %v1075
        %v1077 = vpop.f32.mrb[0].mxu0
        %v1078 = vpop.f32.mrb[0].mxu0
        %v1079 = vpop.f32.mrb[0].mxu0
        %1080 = vdwg.mxu0
        %v1081 = vld [vmem:[%s6] sm:$0x1]
        %v1083 = vlaneseq
        %v1084 = vshrl.u32 %v1083, 7
        %v1085 = vsub.s32 0, %v1084
        %v1086 = vrot.slane %v1081, %v1085
        %v1088 = vadd.f32 %v1076, %v1086
        %v1089 = vadd.f32 %v962, %v1088
        %v1090 = vtanh.pop %v1089
        %1091 = vst [vmem:[%s373] sm:$0xff] %v1090
        %s1092 = sand.u32 %s193, 1
        %s1093 = scalar_lea.sflag [#allocation4], %s1092
        %s1094 = sand.u32 %s193, 1
        %s1095 = smul.addr %s1094, 8
        %s1096 = scalar_lea.vmem [#allocation11], %s1095
        // Predicated region
        $region69: #{tpu_custom_call.1} parent=47 // pred_check
          %p1097 = pneg %p203
        $region70: #{tpu_custom_call.1} parent=47 // pred_check_branch
          %1099 = sbr.rel (%p1097) target = $region72
        $region71: #{tpu_custom_call.1} parent=47 // pred_region
          %s1101 = ssub.s32 128, 128
          %1102 = vsyncadd %s1093, %s1101
          %s1103 = smul.addr %s28, 128
          %s1104 = scalar_lea.hbm %s7, %s1103
          %s1106 = sshll.u32 %s1096, 4
          %s1107 = int_to_ptr.vmem [resolvable:$true] %s1106
          %1109 = dma.vmem_to_hbm [thread:$0]  %s1107, 128, %s1104, %s1093
        $region72: #{tpu_custom_call.1} parent=47 // pred_fallthru
          _
      $region48: #{tpu_custom_call.1} parent=5 // pred_fallthru
        _
      %p1110 = scmp.le.s32.totalorder 2, %s23
      // Predicated region
      $region73: #{tpu_custom_call.1} parent=5 // pred_check
        %p1111 = pneg %p1110
      $region74: #{tpu_custom_call.1} parent=5 // pred_check_branch
        %1113 = sbr.rel (%p1111) target = $region76
      $region75: #{tpu_custom_call.1} parent=5 // pred_region
        %s1114 = ssub.s32 %s23, 2
        // Predicated region
        $region77: #{tpu_custom_call.1} parent=75 // pred_check
          %p1115 = pneg %p209
        $region78: #{tpu_custom_call.1} parent=75 // pred_check_branch
          %1117 = sbr.rel (%p1115) target = $region80
        $region79: #{tpu_custom_call.1} parent=75 // pred_region
          %s1118 = sand.u32 %s194, 1
          %s1119 = scalar_lea.sflag [#allocation4], %s1118
          %s1120 = sand.u32 %s194, 1
          %s1121 = smul.addr %s1120, 8
          %s1122 = scalar_lea.vmem [#allocation11], %s1121
          %1123 = dma.done %s1119, 128
        $region80: #{tpu_custom_call.1} parent=75 // pred_fallthru
          _
      $region76: #{tpu_custom_call.1} parent=5 // pred_fallthru
        _
    $region6: #{tpu_custom_call.1} parent=1 // loop_footer
      %s27 = sadd.s32 1, %s23
    $region7: #{tpu_custom_call.1} parent=1 // loop_footer_branch
      %22 = sbr.rel target = $region3
    $region8: #{tpu_custom_call.1} parent=1 // loop_exit
      _
    %1124 = vsyncpa [#allocation3], 1
    %s1125 = scalar_lea.sflag [#allocation3], 1
    %1126 = vsyncpa %s1125, 1
    %1127 = vsyncpa [#allocation6], 1
    %s1128 = scalar_lea.sflag [#allocation6], 1
    %1129 = vsyncpa %s1128, 1
    %1130 = vsyncpa [#allocation9], 1
    %1131 = vsyncpa [#allocation4], 1
    %s1132 = scalar_lea.sflag [#allocation4], 1
    %1133 = vsyncpa %s1132, 1

</llo_original>
